<compile_context>
chip_gen: v6e
topology: v6e:2x2x1
jax: 0.10.0
libtpu: 0.0.40
codegen_flags: <defaults>
</compile_context>

<pallas_src>
import functools

import jax
import jax.numpy as jnp
import numpy as np
from jax import lax
from jax.experimental import pallas as pl
from jax.experimental.pallas import tpu as pltpu


# ----------------------------------------------------------------------------
# Fast path: stride == 1, odd K, small W  ->  flattened lane-dense layout.
# ----------------------------------------------------------------------------
def _dwconv_flat_kernel(x_ref, w_ref, o_ref, *, ksize, pad, width):
    # x_ref: (r_blk, H*W)   one sublane row per (n, c) plane, W fastest on lanes
    # w_ref: (r_blk, K*K)   per-row (per-channel) depthwise taps
    # o_ref: (r_blk, H*W)   stride==1, odd K  =>  Ho*Wo == H*W
    r_blk, hw = x_ref.shape

    x_f = x_ref[...].astype(jnp.float32)        # single load, cast hoisted
    wts = w_ref[...].astype(jnp.float32)        # tiny, loaded once per step

    # A (kh-p, kw-p) shift in 2-D is a flat lane shift of d = (kh-p)*W + (kw-p).
    # Zero-padding the flat row by p*(W+1) on each side (once, in-register)
    # makes every tap a static lane slice with correct zero fill for rows that
    # fall outside the image.  Columns that fall outside wrap into the
    # neighbouring row and are killed by the per-kw column mask below.
    pw = pad * width + pad
    if pw > 0:
        zedge = jnp.zeros((r_blk, pw), jnp.float32)
        x_pad = jnp.concatenate([zedge, x_f, zedge], axis=1)
    else:
        x_pad = x_f

    # Column index (ow) of every output lane: flat_index mod W.
    col = lax.broadcasted_iota(jnp.int32, (r_blk, hw), 1) % width

    acc = jnp.zeros((r_blk, hw), jnp.float32)
    for kh in range(ksize):
        dh = kh - pad
        for kw in range(ksize):
            dw = kw - pad
            d = dh * width + dw
            # Static in-register lane shift (XLU) from the once-loaded row.
            shifted = x_pad[:, pw + d: pw + d + hw]
            t = kh * ksize + kw
            w_col = wts[:, t:t + 1]                     # (r_blk, 1) tap weights
            if dw == 0:
                term = shifted                          # column always valid
            else:
                valid = jnp.logical_and(col + dw >= 0, col + dw < width)
                term = jnp.where(valid, shifted, 0.0)
            acc = acc + term * w_col
    o_ref[...] = acc.astype(o_ref.dtype)


def _pick_row_block(rows, hw):
    """Rows (batch*channel planes) per grid step for the flattened layout."""
    # Per-step footprint ~ (input + output) x double-buffer, f32 worst case.
    budget = 8 * 1024 * 1024            # comfortably inside v7x's 64 MiB VMEM
    per_row = 2 * 2 * hw * 4
    max_rows = max(8, budget // per_row)
    if rows <= max_rows:
        blk = rows                      # one fat step: overhead-minimal
    else:
        blk = (max_rows // 8) * 8       # multiples of 8 -> full sublane tiles
        while blk > 8 and rows % blk:
            blk -= 8
        if rows % blk:
            blk = rows                  # TODO(synk): ragged row-count tiling
    # With plenty of work, keep >= 4 grid steps so v7x's two TensorCores both
    # get steps and the BlockSpec double buffer has something to overlap.
    # (Never drop below 8 rows: that would waste sublanes again.)
    while blk % 16 == 0 and rows // blk < 4:
        blk //= 2
    return blk


# ----------------------------------------------------------------------------
# General path: stride > 1 (or very wide W) -> channel-blocked 2-D kernel.
# ----------------------------------------------------------------------------
def _dwconv_2d_kernel(x_ref, w_ref, o_ref, xp_ref, *, ksize, stride, pad):
    # x_ref : (C, H, W)        one batch element, all channels
    # w_ref : (C, K*K)
    # o_ref : (C, Ho, Wo)
    # xp_ref: (C, H+2p, W+2p)  f32 VMEM scratch (zero-padded planes)
    cb, h, w = x_ref.shape
    _, ho, wo = o_ref.shape
    _, hp, wp = xp_ref.shape

    x_f = x_ref[...].astype(jnp.float32)
    wts = w_ref[...].astype(jnp.float32)

    if pad > 0:
        # Top/bottom pad rows: full-width, lane-dense stores.
        xp_ref[:, 0:pad, :] = jnp.zeros((cb, pad, wp), jnp.float32)
        xp_ref[:, hp - pad:hp, :] = jnp.zeros((cb, pad, wp), jnp.float32)
        # Interior rows with the left/right halo columns fused into ONE
        # lane-dense store (no masked 1-lane column strips).
        zcol = jnp.zeros((cb, h, pad), jnp.float32)
        xp_ref[:, pad:pad + h, :] = jnp.concatenate([zcol, x_f, zcol], axis=2)
    else:
        xp_ref[...] = x_f

    acc = jnp.zeros((cb, ho, wo), jnp.float32)
    for kh in range(ksize):
        for kw in range(ksize):
            if stride == 1:
                patch = xp_ref[:, kh:kh + ho, kw:kw + wo]
            else:
                patch = xp_ref[:, pl.ds(kh, ho, stride), pl.ds(kw, wo, stride)]
            t = kh * ksize + kw
            acc = acc + patch * wts[:, t:t + 1][:, :, None]
    o_ref[...] = acc.astype(o_ref.dtype)


# ----------------------------------------------------------------------------
# Wrapper
# ----------------------------------------------------------------------------
def depthwise_conv2d(x_nchw, weight_c1kk, *, stride):
    """Matches nn.Conv2d(C, C, K, padding=(K-1)//2, stride, groups=C, bias=False).

    x_nchw:      (N, C, H, W)
    weight_c1kk: (C, 1, K, K)  (PyTorch depthwise weight layout)
    returns:     (N, C, Ho, Wo)
    """
    n, c, h, w = x_nchw.shape
    k = weight_c1kk.shape[-1]
    pad = (k - 1) // 2
    ho = (h + 2 * pad - k) // stride + 1
    wo = (w + 2 * pad - k) // stride + 1

    w_flat = weight_c1kk.reshape(c, k * k)          # (C, K*K), metadata only

    if stride == 1 and k % 2 == 1 and w < 128:
        # Lane-dense flattened path (Ho == H, Wo == W here).
        rows, hw = n * c, h * w
        x_rows = x_nchw.reshape(rows, hw)           # metadata-only reshape
        w_rows = jnp.tile(w_flat, (n, 1))           # (rows, K*K), ~144 B glue
        r_blk = _pick_row_block(rows, hw)

        kernel = functools.partial(_dwconv_flat_kernel,
                                   ksize=k, pad=pad, width=w)
        out = pl.pallas_call(
            kernel,
            out_shape=jax.ShapeDtypeStruct((rows, hw), x_nchw.dtype),
            grid_spec=pltpu.PrefetchScalarGridSpec(
                num_scalar_prefetch=0,
                grid=(rows // r_blk,),
                in_specs=[
                    pl.BlockSpec((r_blk, hw), lambda i: (i, 0)),
                    pl.BlockSpec((r_blk, k * k), lambda i: (i, 0)),
                ],
                out_specs=pl.BlockSpec((r_blk, hw), lambda i: (i, 0)),
            ),
            compiler_params=pltpu.CompilerParams(
                dimension_semantics=("parallel",),
            ),
        )(x_rows, w_rows)
        return out.reshape(n, c, ho, wo)

    # General path: stride > 1 or very wide W.  One batch element (all C
    # channels) per grid step, padded plane built in VMEM scratch.
    # TODO(synk): add an H-tile grid axis with a K-1 row halo (and split C) for
    # planes large enough to exceed v7x's 64 MiB VMEM.
    kernel = functools.partial(_dwconv_2d_kernel,
                               ksize=k, stride=stride, pad=pad)
    out = pl.pallas_call(
        kernel,
        out_shape=jax.ShapeDtypeStruct((n, c, ho, wo), x_nchw.dtype),
        grid_spec=pltpu.PrefetchScalarGridSpec(
            num_scalar_prefetch=0,
            grid=(n,),
            in_specs=[
                pl.BlockSpec((None, c, h, w), lambda i: (i, 0, 0, 0)),
                pl.BlockSpec((c, k * k), lambda i: (0, 0)),
            ],
            out_specs=pl.BlockSpec((None, c, ho, wo), lambda i: (i, 0, 0, 0)),
            scratch_shapes=[
                pltpu.VMEM((c, h + 2 * pad, w + 2 * pad), jnp.float32),
            ],
        ),
        compiler_params=pltpu.CompilerParams(
            dimension_semantics=("parallel",),
        ),
    )(x_nchw, w_flat)
    return out


def _reference(x_nchw, weight_c1kk, *, stride):
    k = weight_c1kk.shape[-1]
    pad = (k - 1) // 2
    c = x_nchw.shape[1]
    return lax.conv_general_dilated(
        x_nchw, weight_c1kk,
        window_strides=(stride, stride),
        padding=((pad, pad), (pad, pad)),
        dimension_numbers=("NCHW", "OIHW", "NCHW"),
        feature_group_count=c,
    )


if __name__ == "__main__":
    # DepthwiseConv2D(in_channels=4, kernal_size=3, stride=1, bias=False)
    N, C, H, W = 2, 4, 16, 16
    K, STRIDE = 3, 1

    key = jax.random.PRNGKey(0)
    kx, kw = jax.random.split(key)
    x = jax.random.normal(kx, (N, C, H, W), dtype=jnp.float32)
    # Deterministic synthetic depthwise weights, PyTorch layout (C, 1, K, K).
    bound = 1.0 / np.sqrt(K * K)  # kaiming-uniform-like bound for groups=C
    weight = jax.random.uniform(kw, (C, 1, K, K), minval=-bound, maxval=bound,
                                dtype=jnp.float32)

    out = depthwise_conv2d(x, weight, stride=STRIDE)
    out = jax.block_until_ready(out)

    ref = jax.block_until_ready(_reference(x, weight, stride=STRIDE))
    np.testing.assert_allclose(np.asarray(out), np.asarray(ref),
                               rtol=1e-5, atol=1e-5)

    print("KERNEL_OK")
</pallas_src>

<mosaic_0001>
module attributes {stable_mosaic.version = 11 : i64} {
  func.func @_dwconv_flat_kernel(%arg0: i32, %arg1: memref<8x256xf32, #tpu.memory_space<vmem>>, %arg2: memref<8x9xf32, #tpu.memory_space<vmem>>, %arg3: memref<8x256xf32, #tpu.memory_space<vmem>>) attributes {dimension_semantics = [#tpu.dimension_semantics<parallel>], iteration_bounds = array<i64: 1>, scalar_prefetch = 0 : i64, scratch_operands = 0 : i64, tpu.core_type = #tpu.core_type<tc>, window_params = [{transform_indices = @transform_0, window_bounds = array<i64: 8, 256>}, {transform_indices = @transform_1, window_bounds = array<i64: 8, 9>}, {transform_indices = @transform_2, window_bounds = array<i64: 8, 256>}]} {
    %c0 = arith.constant 0 : index
    %c0_0 = arith.constant 0 : index
    %0 = vector.load %arg1[%c0, %c0_0] : memref<8x256xf32, #tpu.memory_space<vmem>>, vector<8x256xf32>
    %c0_1 = arith.constant 0 : index
    %c0_2 = arith.constant 0 : index
    %1 = vector.load %arg2[%c0_1, %c0_2] : memref<8x9xf32, #tpu.memory_space<vmem>>, vector<8x9xf32>
    %cst = arith.constant 0.000000e+00 : f32
    %2 = vector.broadcast %cst : f32 to vector<8x17xf32>
    %3 = tpu.concatenate %2, %0, %2 in 1 : vector<8x17xf32>, vector<8x256xf32>, vector<8x17xf32> -> vector<8x290xf32>
    %4 = tpu.iota {dimensions = array<i32: 1>} : vector<8x256xi32>
    %c16_i32 = arith.constant 16 : i32
    %c0_i32 = arith.constant 0 : i32
    %5 = arith.cmpi eq, %c16_i32, %c0_i32 : i32
    %c1_i32 = arith.constant 1 : i32
    %6 = arith.select %5, %c1_i32, %c16_i32 : i32
    %7 = vector.broadcast %6 : i32 to vector<8x256xi32>
    %8 = arith.remsi %4, %7 : vector<8x256xi32>
    %c0_i32_3 = arith.constant 0 : i32
    %9 = vector.broadcast %c0_i32_3 : i32 to vector<8x256xi32>
    %10 = arith.cmpi ne, %8, %9 : vector<8x256xi32>
    %c0_i32_4 = arith.constant 0 : i32
    %11 = vector.broadcast %c0_i32_4 : i32 to vector<8x256xi32>
    %12 = arith.cmpi slt, %8, %11 : vector<8x256xi32>
    %c0_i32_5 = arith.constant 0 : i32
    %13 = arith.cmpi slt, %6, %c0_i32_5 : i32
    %14 = vector.broadcast %13 : i1 to vector<8x256xi1>
    %15 = vector.broadcast %14 : vector<8x256xi1> to vector<8x256xi1>
    %16 = arith.xori %12, %15 : vector<8x256xi1>
    %17 = arith.andi %16, %10 : vector<8x256xi1>
    %18 = vector.broadcast %6 : i32 to vector<8x256xi32>
    %19 = arith.addi %8, %18 : vector<8x256xi32>
    %20 = arith.select %17, %19, %8 : vector<8x256xi1>, vector<8x256xi32>
    %cst_6 = arith.constant 0.000000e+00 : f32
    %21 = vector.broadcast %cst_6 : f32 to vector<8x256xf32>
    %22 = vector.extract_strided_slice %3 {offsets = [0, 0], sizes = [8, 256], strides = [1, 1]} : vector<8x290xf32> to vector<8x256xf32>
    %23 = vector.extract_strided_slice %1 {offsets = [0, 0], sizes = [8, 1], strides = [1, 1]} : vector<8x9xf32> to vector<8x1xf32>
    %c-1_i32 = arith.constant -1 : i32
    %24 = vector.broadcast %c-1_i32 : i32 to vector<8x256xi32>
    %25 = arith.addi %20, %24 : vector<8x256xi32>
    %c0_i32_7 = arith.constant 0 : i32
    %26 = vector.broadcast %c0_i32_7 : i32 to vector<8x256xi32>
    %27 = arith.cmpi sge, %25, %26 : vector<8x256xi32>
    %c-1_i32_8 = arith.constant -1 : i32
    %28 = vector.broadcast %c-1_i32_8 : i32 to vector<8x256xi32>
    %29 = arith.addi %20, %28 : vector<8x256xi32>
    %c16_i32_9 = arith.constant 16 : i32
    %30 = vector.broadcast %c16_i32_9 : i32 to vector<8x256xi32>
    %31 = arith.cmpi slt, %29, %30 : vector<8x256xi32>
    %32 = arith.andi %27, %31 : vector<8x256xi1>
    %cst_10 = arith.constant 0.000000e+00 : f32
    %33 = vector.broadcast %cst_10 : f32 to vector<8x256xf32>
    %34 = arith.select %32, %22, %33 : vector<8x256xi1>, vector<8x256xf32>
    %35 = vector.broadcast %23 : vector<8x1xf32> to vector<8x256xf32>
    %36 = arith.mulf %34, %35 : vector<8x256xf32>
    %37 = arith.addf %21, %36 : vector<8x256xf32>
    %38 = vector.extract_strided_slice %3 {offsets = [0, 1], sizes = [8, 256], strides = [1, 1]} : vector<8x290xf32> to vector<8x256xf32>
    %39 = vector.extract_strided_slice %1 {offsets = [0, 1], sizes = [8, 1], strides = [1, 1]} : vector<8x9xf32> to vector<8x1xf32>
    %40 = vector.broadcast %39 : vector<8x1xf32> to vector<8x256xf32>
    %41 = arith.mulf %38, %40 : vector<8x256xf32>
    %42 = arith.addf %37, %41 : vector<8x256xf32>
    %43 = vector.extract_strided_slice %3 {offsets = [0, 2], sizes = [8, 256], strides = [1, 1]} : vector<8x290xf32> to vector<8x256xf32>
    %44 = vector.extract_strided_slice %1 {offsets = [0, 2], sizes = [8, 1], strides = [1, 1]} : vector<8x9xf32> to vector<8x1xf32>
    %c1_i32_11 = arith.constant 1 : i32
    %45 = vector.broadcast %c1_i32_11 : i32 to vector<8x256xi32>
    %46 = arith.addi %20, %45 : vector<8x256xi32>
    %c0_i32_12 = arith.constant 0 : i32
    %47 = vector.broadcast %c0_i32_12 : i32 to vector<8x256xi32>
    %48 = arith.cmpi sge, %46, %47 : vector<8x256xi32>
    %c1_i32_13 = arith.constant 1 : i32
    %49 = vector.broadcast %c1_i32_13 : i32 to vector<8x256xi32>
    %50 = arith.addi %20, %49 : vector<8x256xi32>
    %c16_i32_14 = arith.constant 16 : i32
    %51 = vector.broadcast %c16_i32_14 : i32 to vector<8x256xi32>
    %52 = arith.cmpi slt, %50, %51 : vector<8x256xi32>
    %53 = arith.andi %48, %52 : vector<8x256xi1>
    %cst_15 = arith.constant 0.000000e+00 : f32
    %54 = vector.broadcast %cst_15 : f32 to vector<8x256xf32>
    %55 = arith.select %53, %43, %54 : vector<8x256xi1>, vector<8x256xf32>
    %56 = vector.broadcast %44 : vector<8x1xf32> to vector<8x256xf32>
    %57 = arith.mulf %55, %56 : vector<8x256xf32>
    %58 = arith.addf %42, %57 : vector<8x256xf32>
    %59 = vector.extract_strided_slice %3 {offsets = [0, 16], sizes = [8, 256], strides = [1, 1]} : vector<8x290xf32> to vector<8x256xf32>
    %60 = vector.extract_strided_slice %1 {offsets = [0, 3], sizes = [8, 1], strides = [1, 1]} : vector<8x9xf32> to vector<8x1xf32>
    %c-1_i32_16 = arith.constant -1 : i32
    %61 = vector.broadcast %c-1_i32_16 : i32 to vector<8x256xi32>
    %62 = arith.addi %20, %61 : vector<8x256xi32>
    %c0_i32_17 = arith.constant 0 : i32
    %63 = vector.broadcast %c0_i32_17 : i32 to vector<8x256xi32>
    %64 = arith.cmpi sge, %62, %63 : vector<8x256xi32>
    %c-1_i32_18 = arith.constant -1 : i32
    %65 = vector.broadcast %c-1_i32_18 : i32 to vector<8x256xi32>
    %66 = arith.addi %20, %65 : vector<8x256xi32>
    %c16_i32_19 = arith.constant 16 : i32
    %67 = vector.broadcast %c16_i32_19 : i32 to vector<8x256xi32>
    %68 = arith.cmpi slt, %66, %67 : vector<8x256xi32>
    %69 = arith.andi %64, %68 : vector<8x256xi1>
    %cst_20 = arith.constant 0.000000e+00 : f32
    %70 = vector.broadcast %cst_20 : f32 to vector<8x256xf32>
    %71 = arith.select %69, %59, %70 : vector<8x256xi1>, vector<8x256xf32>
    %72 = vector.broadcast %60 : vector<8x1xf32> to vector<8x256xf32>
    %73 = arith.mulf %71, %72 : vector<8x256xf32>
    %74 = arith.addf %58, %73 : vector<8x256xf32>
    %75 = vector.extract_strided_slice %3 {offsets = [0, 17], sizes = [8, 256], strides = [1, 1]} : vector<8x290xf32> to vector<8x256xf32>
    %76 = vector.extract_strided_slice %1 {offsets = [0, 4], sizes = [8, 1], strides = [1, 1]} : vector<8x9xf32> to vector<8x1xf32>
    %77 = vector.broadcast %76 : vector<8x1xf32> to vector<8x256xf32>
    %78 = arith.mulf %75, %77 : vector<8x256xf32>
    %79 = arith.addf %74, %78 : vector<8x256xf32>
    %80 = vector.extract_strided_slice %3 {offsets = [0, 18], sizes = [8, 256], strides = [1, 1]} : vector<8x290xf32> to vector<8x256xf32>
    %81 = vector.extract_strided_slice %1 {offsets = [0, 5], sizes = [8, 1], strides = [1, 1]} : vector<8x9xf32> to vector<8x1xf32>
    %c1_i32_21 = arith.constant 1 : i32
    %82 = vector.broadcast %c1_i32_21 : i32 to vector<8x256xi32>
    %83 = arith.addi %20, %82 : vector<8x256xi32>
    %c0_i32_22 = arith.constant 0 : i32
    %84 = vector.broadcast %c0_i32_22 : i32 to vector<8x256xi32>
    %85 = arith.cmpi sge, %83, %84 : vector<8x256xi32>
    %c1_i32_23 = arith.constant 1 : i32
    %86 = vector.broadcast %c1_i32_23 : i32 to vector<8x256xi32>
    %87 = arith.addi %20, %86 : vector<8x256xi32>
    %c16_i32_24 = arith.constant 16 : i32
    %88 = vector.broadcast %c16_i32_24 : i32 to vector<8x256xi32>
    %89 = arith.cmpi slt, %87, %88 : vector<8x256xi32>
    %90 = arith.andi %85, %89 : vector<8x256xi1>
    %cst_25 = arith.constant 0.000000e+00 : f32
    %91 = vector.broadcast %cst_25 : f32 to vector<8x256xf32>
    %92 = arith.select %90, %80, %91 : vector<8x256xi1>, vector<8x256xf32>
    %93 = vector.broadcast %81 : vector<8x1xf32> to vector<8x256xf32>
    %94 = arith.mulf %92, %93 : vector<8x256xf32>
    %95 = arith.addf %79, %94 : vector<8x256xf32>
    %96 = vector.extract_strided_slice %3 {offsets = [0, 32], sizes = [8, 256], strides = [1, 1]} : vector<8x290xf32> to vector<8x256xf32>
    %97 = vector.extract_strided_slice %1 {offsets = [0, 6], sizes = [8, 1], strides = [1, 1]} : vector<8x9xf32> to vector<8x1xf32>
    %c-1_i32_26 = arith.constant -1 : i32
    %98 = vector.broadcast %c-1_i32_26 : i32 to vector<8x256xi32>
    %99 = arith.addi %20, %98 : vector<8x256xi32>
    %c0_i32_27 = arith.constant 0 : i32
    %100 = vector.broadcast %c0_i32_27 : i32 to vector<8x256xi32>
    %101 = arith.cmpi sge, %99, %100 : vector<8x256xi32>
    %c-1_i32_28 = arith.constant -1 : i32
    %102 = vector.broadcast %c-1_i32_28 : i32 to vector<8x256xi32>
    %103 = arith.addi %20, %102 : vector<8x256xi32>
    %c16_i32_29 = arith.constant 16 : i32
    %104 = vector.broadcast %c16_i32_29 : i32 to vector<8x256xi32>
    %105 = arith.cmpi slt, %103, %104 : vector<8x256xi32>
    %106 = arith.andi %101, %105 : vector<8x256xi1>
    %cst_30 = arith.constant 0.000000e+00 : f32
    %107 = vector.broadcast %cst_30 : f32 to vector<8x256xf32>
    %108 = arith.select %106, %96, %107 : vector<8x256xi1>, vector<8x256xf32>
    %109 = vector.broadcast %97 : vector<8x1xf32> to vector<8x256xf32>
    %110 = arith.mulf %108, %109 : vector<8x256xf32>
    %111 = arith.addf %95, %110 : vector<8x256xf32>
    %112 = vector.extract_strided_slice %3 {offsets = [0, 33], sizes = [8, 256], strides = [1, 1]} : vector<8x290xf32> to vector<8x256xf32>
    %113 = vector.extract_strided_slice %1 {offsets = [0, 7], sizes = [8, 1], strides = [1, 1]} : vector<8x9xf32> to vector<8x1xf32>
    %114 = vector.broadcast %113 : vector<8x1xf32> to vector<8x256xf32>
    %115 = arith.mulf %112, %114 : vector<8x256xf32>
    %116 = arith.addf %111, %115 : vector<8x256xf32>
    %117 = vector.extract_strided_slice %3 {offsets = [0, 34], sizes = [8, 256], strides = [1, 1]} : vector<8x290xf32> to vector<8x256xf32>
    %118 = vector.extract_strided_slice %1 {offsets = [0, 8], sizes = [8, 1], strides = [1, 1]} : vector<8x9xf32> to vector<8x1xf32>
    %c1_i32_31 = arith.constant 1 : i32
    %119 = vector.broadcast %c1_i32_31 : i32 to vector<8x256xi32>
    %120 = arith.addi %20, %119 : vector<8x256xi32>
    %c0_i32_32 = arith.constant 0 : i32
    %121 = vector.broadcast %c0_i32_32 : i32 to vector<8x256xi32>
    %122 = arith.cmpi sge, %120, %121 : vector<8x256xi32>
    %c1_i32_33 = arith.constant 1 : i32
    %123 = vector.broadcast %c1_i32_33 : i32 to vector<8x256xi32>
    %124 = arith.addi %20, %123 : vector<8x256xi32>
    %c16_i32_34 = arith.constant 16 : i32
    %125 = vector.broadcast %c16_i32_34 : i32 to vector<8x256xi32>
    %126 = arith.cmpi slt, %124, %125 : vector<8x256xi32>
    %127 = arith.andi %122, %126 : vector<8x256xi1>
    %cst_35 = arith.constant 0.000000e+00 : f32
    %128 = vector.broadcast %cst_35 : f32 to vector<8x256xf32>
    %129 = arith.select %127, %117, %128 : vector<8x256xi1>, vector<8x256xf32>
    %130 = vector.broadcast %118 : vector<8x1xf32> to vector<8x256xf32>
    %131 = arith.mulf %129, %130 : vector<8x256xf32>
    %132 = arith.addf %116, %131 : vector<8x256xf32>
    %c0_36 = arith.constant 0 : index
    %c0_37 = arith.constant 0 : index
    %133 = vector.load %arg3[%c0_36, %c0_37] : memref<8x256xf32, #tpu.memory_space<vmem>>, vector<8x256xf32>
    tpu.vector_store %arg3[%c0_36, %c0_37], %132 {strides = array<i32>} : memref<8x256xf32, #tpu.memory_space<vmem>>, vector<8x256xf32>,
    return
  }
  func.func @transform_0(%arg0: i32) -> (i32, i32) {
    %c0_i32 = arith.constant 0 : i32
    %c0_i32_0 = arith.constant 0 : i32
    return %arg0, %c0_i32 : i32, i32
  }
  func.func @transform_1(%arg0: i32) -> (i32, i32) {
    %c0_i32 = arith.constant 0 : i32
    %c0_i32_0 = arith.constant 0 : i32
    return %arg0, %c0_i32 : i32, i32
  }
  func.func @transform_2(%arg0: i32) -> (i32, i32) {
    %c0_i32 = arith.constant 0 : i32
    %c0_i32_0 = arith.constant 0 : i32
    return %arg0, %c0_i32 : i32, i32
  }
}

</mosaic_0001>

<llo_original>
// kernel: tpu_custom_call.1
$region0: #{tpu_custom_call.1}
  #allocation0 [shape = 'u32[]', space=smem, size = 0x4, offset = 0x4, fixed_abs, tag = 'smem constant byte address 0x4 - core index']
  #allocation1 [shape = 'u32[144,128]{1,0:T(1,128)}', space=vmem, size = 0x12000, scoped, tag = 'internal scratch']
  %s0 = inlined_call_operand.hbm [shape: f32[8,256], index: 0, kind: input, shape index: {}]
  %s1 = inlined_call_operand.hbm [shape: f32[8,9], index: 1, kind: input, shape index: {}]
  %s2 = inlined_call_operand.hbm [shape: f32[8,256], index: 2, kind: output, shape index: {}]
  %s3 = sld [smem:[#allocation0]]
  $region26: #{tpu_custom_call.1} parent=0
    _
  %s5 = ssub.s32 1, %s3
  %s6 = scalar_select 0, %s5, %s3
  $region1: #{tpu_custom_call.1} parent=0
    #allocation2 [shape = 'u8[8192]{0}', space=vmem, size = 0x2000, scoped, tag = 'input window, operand 0, single buffered']
    #allocation3 [shape = 's32[1]{0}', space=sflag, size = 0x4, scoped, tag = 'scoped memory for tpu_custom_call.1']
    #allocation4 [shape = 's32[1]{0}', space=sflag, size = 0x4, scoped, tag = 'scoped memory for tpu_custom_call.1']
    #allocation5 [shape = 'u8[4096]{0}', space=vmem, size = 0x1000, scoped, tag = 'input window, operand 1, single buffered']
    #allocation6 [shape = 's32[1]{0}', space=sflag, size = 0x4, scoped, tag = 'scoped memory for tpu_custom_call.1']
    #allocation7 [shape = 'u8[8192]{0}', space=vmem, size = 0x2000, scoped, tag = 'output window, operand 0, single buffered']
    %7 = vsyncpa [#allocation3], 0
    %8 = vsyncpa [#allocation6], 0
    %9 = vsyncpa [#allocation4], 0
    // Predicated region
    $region2: #{tpu_custom_call.1} parent=1 // pred_check
      _
    $region3: #{tpu_custom_call.1} parent=1 // pred_check_branch
      %11 = sbr.rel (0) target = $region5
    $region4: #{tpu_custom_call.1} parent=1 // pred_region
      %s13 = ssub.s32 256, 256
      %14 = vsyncadd [#allocation3], %s13
      %s16 = sshll.u32 [#allocation2], 4
      %s17 = int_to_ptr.vmem [resolvable:$true] %s16
      %19 = dma.hbm_to_vmem [thread:$0]  %s0, 256, %s17, [#allocation3]
    $region5: #{tpu_custom_call.1} parent=1 // pred_fallthru
      _
    // Predicated region
    $region6: #{tpu_custom_call.1} parent=1 // pred_check
      _
    $region7: #{tpu_custom_call.1} parent=1 // pred_check_branch
      %21 = sbr.rel (0) target = $region9
    $region8: #{tpu_custom_call.1} parent=1 // pred_region
      %s23 = ssub.s32 128, 128
      %24 = vsyncadd [#allocation6], %s23
      %s26 = sshll.u32 [#allocation5], 4
      %s27 = int_to_ptr.vmem [resolvable:$true] %s26
      %29 = dma.hbm_to_vmem [thread:$0]  %s1, 128, %s27, [#allocation6]
    $region9: #{tpu_custom_call.1} parent=1 // pred_fallthru
      _
    // Predicated region
    $region10: #{tpu_custom_call.1} parent=1 // pred_check
      _
    $region11: #{tpu_custom_call.1} parent=1 // pred_check_branch
      %31 = sbr.rel (0) target = $region13
    $region12: #{tpu_custom_call.1} parent=1 // pred_region
      %32 = dma.done [#allocation3], 256
    $region13: #{tpu_custom_call.1} parent=1 // pred_fallthru
      _
    // Predicated region
    $region14: #{tpu_custom_call.1} parent=1 // pred_check
      _
    $region15: #{tpu_custom_call.1} parent=1 // pred_check_branch
      %34 = sbr.rel (0) target = $region17
    $region16: #{tpu_custom_call.1} parent=1 // pred_region
      %35 = dma.done [#allocation6], 128
    $region17: #{tpu_custom_call.1} parent=1 // pred_fallthru
      _
    %v36 = vld [vmem:[#allocation2] sm:$0xff]
    %v37 = vld [vmem:[#allocation2 + $0x8] sm:$0xff]
    %v38 = vld [vmem:[#allocation5] sm:$0xff]
    %41 = vrot.lane.b32.xlu0 %v36, 17
    %v42 = vpop.permute.xlu0 %41
    %43 = vrot.lane.b32.xlu0 %v37, 17
    %v44 = vpop.permute.xlu0 %43
    %vm45 = vcmask 138240
    %v46 = vsel %vm45, %v42, %v44
    %v50 = vsel %vm45, 0.0, %v42
    %v51 = vsel %vm45, %v44, 0.0
    %v52 = vlaneseq
    %v53 = vand.u32 %v52, 127
    %v54 = vadd.s32 %v53, 128
    %vm55 = vcmp.lt.s32.totalorder %v53, 0
    %v56 = vsub.s32 0, %v53
    %v57 = vsel %vm55, %v56, %v53
    %v58 = vshrl.u32 %v57, 4
    %v59 = vand.u32 %v57, 15
    %v60 = vsub.s32 0, %v59
    %v61 = vsel %vm55, %v60, %v59
    %vm62 = vcmp.lt.s32.totalorder %v54, 0
    %v63 = vsub.s32 0, %v54
    %v64 = vsel %vm62, %v63, %v54
    %v65 = vshrl.u32 %v64, 4
    %v66 = vand.u32 %v64, 15
    %v67 = vsub.s32 0, %v66
    %v68 = vsel %vm62, %v67, %v66
    %vm69 = vcmp.ne.s32.totalorder %v61, 0
    %vm70 = vcmp.ne.s32.totalorder %v68, 0
    %vm71 = vcmp.lt.s32.totalorder %v61, 0
    %vm72 = vcmp.lt.s32.totalorder %v68, 0
    %vm73 = vmand %vm71, %vm69
    %vm74 = vmand %vm72, %vm70
    %v75 = vadd.s32 %v61, 16
    %v76 = vadd.s32 %v68, 16
    %v77 = vsel %vm73, %v75, %v61
    %v78 = vsel %vm74, %v76, %v68
    %v79 = vadd.s32 %v77, 4294967295
    %v80 = vadd.s32 %v78, 4294967295
    %vm81 = vcmp.ge.s32.totalorder %v79, 0
    %vm82 = vcmp.ge.s32.totalorder %v80, 0
    %vm83 = vcmp.lt.s32.totalorder %v79, 16
    %vm84 = vcmp.lt.s32.totalorder %v80, 16
    %vm85 = vmand %vm81, %vm83
    %vm86 = vmand %vm82, %vm84
    %v87 = vsel %vm85, %v50, 0.0
    %v88 = vsel %vm86, %v46, 0.0
    %90 = vset.pattern.permute.xlu0 0
    %91 = vperm.xlu0 %90, %v38
    %v92 = vpop.permute.xlu0 %91
    %v94 = vmul.f32 %v87, %v92
    %v95 = vmul.f32 %v88, %v92
    %v96 = vadd.f32 %v94, 0.0
    %v97 = vadd.f32 %v95, 0.0
    %98 = vset.pattern.permute.xlu0 1
    %99 = vperm.xlu0 %98, %v38
    %v100 = vpop.permute.xlu0 %99
    %v102 = vmul.f32 %v50, %v100
    %v103 = vmul.f32 %v46, %v100
    %v104 = vmul.f32 %v51, %v100
    %108 = vrot.lane.b32.xlu0 %v102, 127
    %v109 = vpop.permute.xlu0 %108
    %110 = vrot.lane.b32.xlu0 %v103, 127
    %v111 = vpop.permute.xlu0 %110
    %112 = vrot.lane.b32.xlu0 %v104, 127
    %v113 = vpop.permute.xlu0 %112
    %vm114 = vcmask 1039360
    %v115 = vsel %vm114, %v109, %v111
    %v116 = vsel %vm114, %v111, %v113
    %v119 = vadd.f32 %v96, %v115
    %v120 = vadd.f32 %v97, %v116
    %v121 = vadd.s32 %v77, 1
    %v122 = vadd.s32 %v78, 1
    %vm123 = vcmp.ge.s32.totalorder %v121, 0
    %vm124 = vcmp.ge.s32.totalorder %v122, 0
    %vm125 = vcmp.lt.s32.totalorder %v121, 16
    %vm126 = vcmp.lt.s32.totalorder %v122, 16
    %vm127 = vmand %vm123, %vm125
    %vm128 = vmand %vm124, %vm126
    %131 = vrot.lane.b32.xlu0 %v50, 126
    %v132 = vpop.permute.xlu0 %131
    %133 = vrot.lane.b32.xlu0 %v46, 126
    %v134 = vpop.permute.xlu0 %133
    %135 = vrot.lane.b32.xlu0 %v51, 126
    %v136 = vpop.permute.xlu0 %135
    %vm137 = vcmask 1031168
    %v138 = vsel %vm137, %v132, %v134
    %v139 = vsel %vm137, %v134, %v136
    %v142 = vsel %vm127, %v138, 0.0
    %v143 = vsel %vm128, %v139, 0.0
    %144 = vset.pattern.permute.xlu0 2
    %145 = vperm.xlu0 %144, %v38
    %v146 = vpop.permute.xlu0 %145
    %v148 = vmul.f32 %v142, %v146
    %v149 = vmul.f32 %v143, %v146
    %v150 = vadd.f32 %v119, %v148
    %v151 = vadd.f32 %v120, %v149
    %152 = vrot.lane.b32.xlu0 %v50, 112
    %v153 = vpop.permute.xlu0 %152
    %154 = vrot.lane.b32.xlu0 %v46, 112
    %v155 = vpop.permute.xlu0 %154
    %156 = vrot.lane.b32.xlu0 %v51, 112
    %v157 = vpop.permute.xlu0 %156
    %vm158 = vcmask 916480
    %v159 = vsel %vm158, %v153, %v155
    %v160 = vsel %vm158, %v155, %v157
    %v163 = vsel %vm85, %v159, 0.0
    %v164 = vsel %vm86, %v160, 0.0
    %165 = vset.pattern.permute.xlu0 3
    %166 = vperm.xlu0 %165, %v38
    %v167 = vpop.permute.xlu0 %166
    %v169 = vmul.f32 %v163, %v167
    %v170 = vmul.f32 %v164, %v167
    %v171 = vadd.f32 %v150, %v169
    %v172 = vadd.f32 %v151, %v170
    %173 = vset.pattern.permute.xlu0 4
    %174 = vperm.xlu0 %173, %v38
    %v175 = vpop.permute.xlu0 %174
    %v177 = vmul.f32 %v50, %v175
    %v178 = vmul.f32 %v46, %v175
    %v179 = vmul.f32 %v51, %v175
    %183 = vrot.lane.b32.xlu0 %v177, 111
    %v184 = vpop.permute.xlu0 %183
    %185 = vrot.lane.b32.xlu0 %v178, 111
    %v186 = vpop.permute.xlu0 %185
    %187 = vrot.lane.b32.xlu0 %v179, 111
    %v188 = vpop.permute.xlu0 %187
    %vm189 = vcmask 908288
    %v190 = vsel %vm189, %v184, %v186
    %v191 = vsel %vm189, %v186, %v188
    %v194 = vadd.f32 %v171, %v190
    %v195 = vadd.f32 %v172, %v191
    %196 = vrot.lane.b32.xlu0 %v50, 110
    %v197 = vpop.permute.xlu0 %196
    %198 = vrot.lane.b32.xlu0 %v46, 110
    %v199 = vpop.permute.xlu0 %198
    %200 = vrot.lane.b32.xlu0 %v51, 110
    %v201 = vpop.permute.xlu0 %200
    %vm202 = vcmask 900096
    %v203 = vsel %vm202, %v197, %v199
    %v204 = vsel %vm202, %v199, %v201
    %v207 = vsel %vm127, %v203, 0.0
    %v208 = vsel %vm128, %v204, 0.0
    %209 = vset.pattern.permute.xlu0 5
    %210 = vperm.xlu0 %209, %v38
    %v211 = vpop.permute.xlu0 %210
    %v213 = vmul.f32 %v207, %v211
    %v214 = vmul.f32 %v208, %v211
    %v215 = vadd.f32 %v194, %v213
    %v216 = vadd.f32 %v195, %v214
    %217 = vrot.lane.b32.xlu0 %v50, 96
    %v218 = vpop.permute.xlu0 %217
    %219 = vrot.lane.b32.xlu0 %v46, 96
    %v220 = vpop.permute.xlu0 %219
    %221 = vrot.lane.b32.xlu0 %v51, 96
    %v222 = vpop.permute.xlu0 %221
    %vm223 = vcmask 785408
    %v224 = vsel %vm223, %v218, %v220
    %v225 = vsel %vm223, %v220, %v222
    %v228 = vsel %vm85, %v224, 0.0
    %v229 = vsel %vm86, %v225, 0.0
    %230 = vset.pattern.permute.xlu0 6
    %231 = vperm.xlu0 %230, %v38
    %v232 = vpop.permute.xlu0 %231
    %v234 = vmul.f32 %v228, %v232
    %v235 = vmul.f32 %v229, %v232
    %v236 = vadd.f32 %v215, %v234
    %v237 = vadd.f32 %v216, %v235
    %238 = vset.pattern.permute.xlu0 7
    %239 = vperm.xlu0 %238, %v38
    %v240 = vpop.permute.xlu0 %239
    %v242 = vmul.f32 %v50, %v240
    %v243 = vmul.f32 %v46, %v240
    %v244 = vmul.f32 %v51, %v240
    %248 = vrot.lane.b32.xlu0 %v242, 95
    %v249 = vpop.permute.xlu0 %248
    %250 = vrot.lane.b32.xlu0 %v243, 95
    %v251 = vpop.permute.xlu0 %250
    %252 = vrot.lane.b32.xlu0 %v244, 95
    %v253 = vpop.permute.xlu0 %252
    %vm254 = vcmask 777216
    %v255 = vsel %vm254, %v249, %v251
    %v256 = vsel %vm254, %v251, %v253
    %v259 = vadd.f32 %v236, %v255
    %v260 = vadd.f32 %v237, %v256
    %261 = vrot.lane.b32.xlu0 %v50, 94
    %v262 = vpop.permute.xlu0 %261
    %263 = vrot.lane.b32.xlu0 %v46, 94
    %v264 = vpop.permute.xlu0 %263
    %265 = vrot.lane.b32.xlu0 %v51, 94
    %v266 = vpop.permute.xlu0 %265
    %vm267 = vcmask 769024
    %v268 = vsel %vm267, %v262, %v264
    %v269 = vsel %vm267, %v264, %v266
    %v272 = vsel %vm127, %v268, 0.0
    %v273 = vsel %vm128, %v269, 0.0
    %274 = vset.pattern.permute.xlu0 8
    %275 = vperm.xlu0 %274, %v38
    %v276 = vpop.permute.xlu0 %275
    %v278 = vmul.f32 %v272, %v276
    %v279 = vmul.f32 %v273, %v276
    %v280 = vadd.f32 %v259, %v278
    %v281 = vadd.f32 %v260, %v279
    %282 = vst [vmem:[#allocation7] sm:$0xff] %v280
    %283 = vst [vmem:[#allocation7 + $0x8] sm:$0xff] %v281
    // Predicated region
    $region18: #{tpu_custom_call.1} parent=1 // pred_check
      _
    $region19: #{tpu_custom_call.1} parent=1 // pred_check_branch
      %285 = sbr.rel (0) target = $region21
    $region20: #{tpu_custom_call.1} parent=1 // pred_region
      %s287 = ssub.s32 256, 256
      %288 = vsyncadd [#allocation4], %s287
      %s290 = sshll.u32 [#allocation7], 4
      %s291 = int_to_ptr.vmem [resolvable:$true] %s290
      %293 = dma.vmem_to_hbm [thread:$0]  %s291, 256, %s2, [#allocation4]
    $region21: #{tpu_custom_call.1} parent=1 // pred_fallthru
      _
    // Predicated region
    $region22: #{tpu_custom_call.1} parent=1 // pred_check
      _
    $region23: #{tpu_custom_call.1} parent=1 // pred_check_branch
      %295 = sbr.rel (0) target = $region25
    $region24: #{tpu_custom_call.1} parent=1 // pred_region
      %296 = dma.done [#allocation4], 256
    $region25: #{tpu_custom_call.1} parent=1 // pred_fallthru
      _
    %297 = vsyncpa [#allocation3], 1
    %298 = vsyncpa [#allocation6], 1
    %299 = vsyncpa [#allocation4], 1

</llo_original>
